<compile_context>
chip_gen: v5e
topology: v5e:2x2
jax: 0.10.0
libtpu: 0.0.40
codegen_flags: <defaults>
</compile_context>

<pallas_src>
import jax
import jax.numpy as jnp
from jax.experimental import pallas as pl
from jax.experimental.pallas import tpu as pltpu

# ---- problem sizes (small, consistent with the module) ----
B = 2         # batch
S = 8         # sequence length
D_MODEL = 32  # hidden size
V = 128       # num_discrete_tokens (lane-dense: multiple of 128)


def _embedding_decoder_kernel(x_ref, wt_ref, b_ref, out_ref):
    """Single invocation: logits = x @ W_t + bias, one lane-dense store.

    x_ref:   (N, D)   flattened hidden states, bf16 (N = B*S)
    wt_ref:  (D, V)   pre-transposed embedding weight, bf16, lane-dense
    b_ref:   (1, V)   decoder bias, f32
    out_ref: (N, V)   logits, f32
    """
    x = x_ref[...]                                   # (N, D) bf16
    wt = wt_ref[...]                                 # (D, V) bf16
    # MXU-native contraction: contract last axis of x with first axis of W_t.
    logits = jax.lax.dot_general(
        x, wt,
        dimension_numbers=(((1,), (0,)), ((), ())),
        preferred_element_type=jnp.float32,
    )                                                # (N, V) f32
    # f32 bias add fused into the single lane-dense store (VPU-safe on v5e).
    out_ref[...] = logits + b_ref[...]


def sma_embedding_decoder(hidden_states, embedding_weight, bias):
    """hidden_states: (B, S, D); embedding_weight: (V, D); bias: (V,).

    Returns logits of shape (B, S, V), matching SMAEmbeddingDecoder.forward.
    """
    b, s, d = hidden_states.shape
    v = embedding_weight.shape[0]
    n = b * s

    # Layout plumbing + dtype narrowing outside the kernel:
    #  - flatten tokens, cast activations to bf16 (single-pass MXU)
    #  - pre-transpose the weight once to a lane-dense (D, V) bf16 tile
    x2d = hidden_states.reshape(n, d).astype(jnp.bfloat16)
    w_t = jnp.transpose(embedding_weight).astype(jnp.bfloat16)  # (D, V)
    bias2d = bias.reshape(1, v).astype(jnp.float32)

    flops = 2 * n * v * d
    bytes_accessed = (x2d.size * 2) + (w_t.size * 2) + (bias2d.size * 4) + (n * v * 4)

    out2d = pl.pallas_call(
        _embedding_decoder_kernel,
        out_shape=jax.ShapeDtypeStruct((n, v), jnp.float32),
        in_specs=[
            pl.BlockSpec(memory_space=pltpu.MemorySpace.VMEM),  # x (full array)
            pl.BlockSpec(memory_space=pltpu.MemorySpace.VMEM),  # W^T (D, V)
            pl.BlockSpec(memory_space=pltpu.MemorySpace.VMEM),  # bias (1, V)
        ],
        out_specs=pl.BlockSpec(memory_space=pltpu.MemorySpace.VMEM),
        cost_estimate=pl.CostEstimate(
            flops=flops, transcendentals=0, bytes_accessed=bytes_accessed),
    )(x2d, w_t, bias2d)

    return out2d.reshape(b, s, v)


def ref_forward_f32(hidden_states, embedding_weight, bias):
    """Pure-JAX f32 reference mirroring the PyTorch forward exactly."""
    b, s, d = hidden_states.shape
    out = hidden_states.reshape(-1, d) @ embedding_weight.T
    out = out + bias
    return out.reshape(b, s, embedding_weight.shape[0])


def ref_forward_bf16(hidden_states, embedding_weight, bias):
    """Reference with bf16 matmul operands / f32 accumulation (matches kernel)."""
    b, s, d = hidden_states.shape
    x = hidden_states.reshape(-1, d).astype(jnp.bfloat16)
    w_t = jnp.transpose(embedding_weight).astype(jnp.bfloat16)
    out = jax.lax.dot_general(
        x, w_t, dimension_numbers=(((1,), (0,)), ((), ())),
        preferred_element_type=jnp.float32)
    out = out + bias.astype(jnp.float32)
    return out.reshape(b, s, embedding_weight.shape[0])


if __name__ == "__main__":
    key = jax.random.PRNGKey(0)
    k_hs, k_w, k_b = jax.random.split(key, 3)

    hidden_states = jax.random.normal(k_hs, (B, S, D_MODEL), dtype=jnp.float32)
    # nn.Embedding(num_discrete_tokens, d_model).weight -> (V, D_MODEL)
    embedding_weight = 0.05 * jax.random.normal(k_w, (V, D_MODEL), dtype=jnp.float32)
    # Module initializes bias to zeros; use a small random bias for a stricter test.
    bias = 0.01 * jax.random.normal(k_b, (V,), dtype=jnp.float32)

    out = sma_embedding_decoder(hidden_states, embedding_weight, bias)
    out = jax.block_until_ready(out)
    assert out.shape == (B, S, V), f"unexpected output shape {out.shape}"

    # Tight check against a reference doing the identical bf16-operand matmul.
    ref_bf16 = ref_forward_bf16(hidden_states, embedding_weight, bias)
    assert jnp.allclose(out, ref_bf16, atol=1e-5, rtol=1e-5), "bf16-matched logits mismatch"

    # Loose check against the exact f32 PyTorch-equivalent forward
    # (bf16 operand rounding => relaxed tolerance).
    ref_f32 = ref_forward_f32(hidden_states, embedding_weight, bias)
    assert jnp.allclose(out, ref_f32, atol=2e-2, rtol=2e-2), "f32 reference mismatch"

    print("KERNEL_OK")
</pallas_src>

<mosaic_0001>
module attributes {stable_mosaic.version = 11 : i64} {
  func.func @_embedding_decoder_kernel(%arg0: memref<16x32xbf16, #tpu.memory_space<vmem>>, %arg1: memref<32x128xbf16, #tpu.memory_space<vmem>>, %arg2: memref<1x128xf32, #tpu.memory_space<vmem>>, %arg3: memref<16x128xf32, #tpu.memory_space<vmem>>) attributes {dimension_semantics = [], scalar_prefetch = 0 : i64, scratch_operands = 0 : i64, tpu.core_type = #tpu.core_type<tc>} {
    %c0 = arith.constant 0 : index
    %c0_0 = arith.constant 0 : index
    %0 = vector.load %arg0[%c0, %c0_0] : memref<16x32xbf16, #tpu.memory_space<vmem>>, vector<16x32xbf16>
    %c0_1 = arith.constant 0 : index
    %c0_2 = arith.constant 0 : index
    %1 = vector.load %arg1[%c0_1, %c0_2] : memref<32x128xbf16, #tpu.memory_space<vmem>>, vector<32x128xbf16>
    %cst = arith.constant dense<0.000000e+00> : vector<16x128xf32>
    %2 = tpu.matmul %0, %1, %cst {dimension_numbers = #tpu.dot_dimension_numbers<[1], [0], [0], [1], [0, 0, 1, 1], [], []>} : vector<16x32xbf16>, vector<32x128xbf16>, vector<16x128xf32> -> vector<16x128xf32>
    %c0_3 = arith.constant 0 : index
    %c0_4 = arith.constant 0 : index
    %3 = vector.load %arg2[%c0_3, %c0_4] : memref<1x128xf32, #tpu.memory_space<vmem>>, vector<1x128xf32>
    %4 = vector.broadcast %3 : vector<1x128xf32> to vector<16x128xf32>
    %5 = arith.addf %2, %4 : vector<16x128xf32>
    %c0_5 = arith.constant 0 : index
    %c0_6 = arith.constant 0 : index
    %6 = vector.load %arg3[%c0_5, %c0_6] : memref<16x128xf32, #tpu.memory_space<vmem>>, vector<16x128xf32>
    tpu.vector_store %arg3[%c0_5, %c0_6], %5 {strides = array<i32>} : memref<16x128xf32, #tpu.memory_space<vmem>>, vector<16x128xf32>,
    return
  }
}

</mosaic_0001>

<llo_original>
// kernel: tpu_custom_call.1
$region0: #{tpu_custom_call.1}
  #allocation0 [shape = 'u32[]', space=smem, size = 0x4, offset = 0x4, fixed_abs, tag = 'smem constant byte address 0x4 - core index']
  #allocation1 [shape = 'u32[72,128]{1,0:T(1,128)}', space=vmem, size = 0x9000, scoped, tag = 'internal scratch']
  %s0 = inlined_call_operand.hbm [shape: bf16[16,32], index: 0, kind: input, shape index: {}]
  %s1 = inlined_call_operand.hbm [shape: bf16[32,128], index: 1, kind: input, shape index: {}]
  %s2 = inlined_call_operand.vmem [shape: f32[1,128], index: 2, kind: input, shape index: {}]
  %s3 = inlined_call_operand.hbm [shape: f32[16,128], index: 3, kind: output, shape index: {}]
  %s4 = sld [smem:[#allocation0]]
  $region30: #{tpu_custom_call.1} parent=0
    _
  %s6 = ssub.s32 1, %s4
  %s7 = scalar_select 0, %s6, %s4
  $region1: #{tpu_custom_call.1} parent=0
    #allocation2 [shape = 'u8[4096]{0}', space=vmem, size = 0x1000, scoped, tag = 'input window, operand 0, single buffered']
    #allocation3 [shape = 's32[1]{0}', space=sflag, size = 0x4, scoped, tag = 'scoped memory for tpu_custom_call.1']
    #allocation4 [shape = 's32[1]{0}', space=sflag, size = 0x4, scoped, tag = 'scoped memory for tpu_custom_call.1']
    #allocation5 [shape = 'u8[8192]{0}', space=vmem, size = 0x2000, scoped, tag = 'input window, operand 1, single buffered']
    #allocation6 [shape = 's32[1]{0}', space=sflag, size = 0x4, scoped, tag = 'scoped memory for tpu_custom_call.1']
    #allocation7 [shape = 'u8[8192]{0}', space=vmem, size = 0x2000, scoped, tag = 'output window, operand 0, single buffered']
    %8 = vsyncpa [#allocation3], 0
    %9 = vsyncpa [#allocation6], 0
    %10 = vsyncpa [#allocation4], 0
    // Predicated region
    $region2: #{tpu_custom_call.1} parent=1 // pred_check
      _
    $region3: #{tpu_custom_call.1} parent=1 // pred_check_branch
      %12 = sbr.rel (0) target = $region5
    $region4: #{tpu_custom_call.1} parent=1 // pred_region
      %14 = vsyncadd [#allocation3], 0
      %s15 = sshll.u32 %s0, 4
      %s16 = int_to_ptr.hbm [resolvable:$true] %s15
      %s17 = sshll.u32 [#allocation2], 4
      %s18 = int_to_ptr.vmem [resolvable:$true] %s17
      %23 = dma.hbm_to_vmem [thread:$0]  %s16, 128, %s18, [#allocation3], 64, 64, 4
    $region5: #{tpu_custom_call.1} parent=1 // pred_fallthru
      _
    // Predicated region
    $region6: #{tpu_custom_call.1} parent=1 // pred_check
      _
    $region7: #{tpu_custom_call.1} parent=1 // pred_check_branch
      %25 = sbr.rel (0) target = $region9
    $region8: #{tpu_custom_call.1} parent=1 // pred_region
      %27 = vsyncadd [#allocation6], 0
      %s28 = sshll.u32 %s1, 4
      %s29 = int_to_ptr.hbm [resolvable:$true] %s28
      %s30 = sshll.u32 [#allocation5], 4
      %s31 = int_to_ptr.vmem [resolvable:$true] %s30
      %36 = dma.hbm_to_vmem [thread:$0]  %s29, 256, %s31, [#allocation6], 64, 64, 4
    $region9: #{tpu_custom_call.1} parent=1 // pred_fallthru
      _
    // Predicated region
    $region10: #{tpu_custom_call.1} parent=1 // pred_check
      _
    $region11: #{tpu_custom_call.1} parent=1 // pred_check_branch
      %38 = sbr.rel (0) target = $region13
    $region12: #{tpu_custom_call.1} parent=1 // pred_region
      _
    $region13: #{tpu_custom_call.1} parent=1 // pred_fallthru
      _
    // Predicated region
    $region14: #{tpu_custom_call.1} parent=1 // pred_check
      _
    $region15: #{tpu_custom_call.1} parent=1 // pred_check_branch
      %40 = sbr.rel (0) target = $region17
    $region16: #{tpu_custom_call.1} parent=1 // pred_region
      %42 = dma.done [#allocation3], 128
    $region17: #{tpu_custom_call.1} parent=1 // pred_fallthru
      _
    // Predicated region
    $region18: #{tpu_custom_call.1} parent=1 // pred_check
      _
    $region19: #{tpu_custom_call.1} parent=1 // pred_check_branch
      %44 = sbr.rel (0) target = $region21
    $region20: #{tpu_custom_call.1} parent=1 // pred_region
      %46 = dma.done [#allocation6], 256
    $region21: #{tpu_custom_call.1} parent=1 // pred_fallthru
      _
    %v48 = vld [vmem:[#allocation2] sm:$0xf]
    %v49 = vld [vmem:[#allocation2 + $0x4] sm:$0xf]
    %v50 = vld [vmem:[#allocation5] sm:$0xf]
    %v51 = vld [vmem:[#allocation5 + $0x4] sm:$0xf]
    %v52 = vld [vmem:[#allocation5 + $0x8] sm:$0xf]
    %v53 = vld [vmem:[#allocation5 + $0xc] sm:$0xf]
    %v54 = vld [vmem:[%s2] sm:$0x1]
    %v56 = vperm.slane %v54, 0
    %v60 = vunpack.c.l.b16 %v48
    %v61 = vunpack.c.l.b16 %v49
    %v62 = vpack.c.b16 %v61, %v60
    %v67 = vunpack.c.l.b16 %v50
    %v68 = vunpack.c.l.b16 %v51
    %v69 = vunpack.c.l.b16 %v52
    %v70 = vunpack.c.l.b16 %v53
    %v71 = vpack.c.b16 %v68, %v67
    %v72 = vpack.c.b16 %v70, %v69
    %vm75 = vcmask 261120
    %v77 = vsel %vm75, %v62, 0
    %79 = vmatpush.bf16.msra.mxu0 0
    %80 = vmatpush.bf16.msra.mxu0 0
    %81 = vmatpush.bf16.msra.mxu0 0
    %82 = vmatpush.bf16.msra.mxu0 0
    %83 = vmatpush.bf16.msra.mxu0 0
    %84 = vmatpush.bf16.msra.mxu0 0
    %85 = vmatpush.bf16.msra.mxu0 %v72
    %86 = vmatpush.bf16.msra.mxu0 %v71
    %87 = vmatmul.bf16.gmra.mxu0 %v77
    %v88 = vpop.f32.mrf.mxu0
    %v89 = vadd.f32 %v56, %v88
    %v90 = vpop.f32.mrf.mxu0
    %v91 = vadd.f32 %v56, %v90
    %92 = vdwg.mxu0
    %93 = vst [vmem:[#allocation7] sm:$0xff] %v89
    %94 = vst [vmem:[#allocation7 + $0x8] sm:$0xff] %v91
    // Predicated region
    $region22: #{tpu_custom_call.1} parent=1 // pred_check
      _
    $region23: #{tpu_custom_call.1} parent=1 // pred_check_branch
      %96 = sbr.rel (0) target = $region25
    $region24: #{tpu_custom_call.1} parent=1 // pred_region
      %98 = vsyncadd [#allocation4], 0
      %s99 = sshll.u32 [#allocation7], 4
      %s100 = int_to_ptr.vmem [resolvable:$true] %s99
      %s101 = sshll.u32 %s3, 4
      %s102 = int_to_ptr.hbm [resolvable:$true] %s101
      %107 = dma.vmem_to_hbm [thread:$0]  %s100, 256, %s102, [#allocation4], 128, 128, 8
    $region25: #{tpu_custom_call.1} parent=1 // pred_fallthru
      _
    // Predicated region
    $region26: #{tpu_custom_call.1} parent=1 // pred_check
      _
    $region27: #{tpu_custom_call.1} parent=1 // pred_check_branch
      %109 = sbr.rel (0) target = $region29
    $region28: #{tpu_custom_call.1} parent=1 // pred_region
      %111 = dma.done [#allocation4], 256
    $region29: #{tpu_custom_call.1} parent=1 // pred_fallthru
      _
    %112 = vsyncpa [#allocation3], 1
    %113 = vsyncpa [#allocation6], 1
    %114 = vsyncpa [#allocation4], 1

</llo_original>
